<compile_context>
chip_gen: v7x
topology: tpu7x:2x2x1
jax: 0.10.0
libtpu: 0.0.40
codegen_flags: <defaults>
</compile_context>

<pallas_src>
import numpy as np
import jax
import jax.numpy as jnp
from jax.experimental import pallas as pl
from jax.experimental.pallas import tpu as pltpu

BN_EPS = 1e-5


# ------------------------------------------------------------------------------------
# Fused kernel: one block of TR output rows per grid step.
# ------------------------------------------------------------------------------------
def _fused_downsample_kernel(halo_ref, xs_ref, w_ref, sh_ref, scale_ref, shift_ref, o_ref):
    # halo_ref:  (1, 3, W+2, Cin)     bf16  top 3 rows of this block's input band
    # xs_ref:    (1, 2*TR, W+2, Cin)  bf16  remaining band rows (non-overlapping slabs)
    # w_ref:     (9*Cin, Cop)         bf16  raw conv weights, im2col K-order (ky, kx, cin)
    # sh_ref:    (Wo, W)              bf16  horizontal [1,2,1] blur + stride 2 + reflect
    # scale_ref: (1, Cop)             f32   s1*s2/16 (BN1 scale, blur 1/16, BN2 scale)
    # shift_ref: (1, Cop)             f32   conv bias + BN1 shift + BN2 shift (folded)
    # o_ref:     (1, TR, Wo, Cop)     f32   TR output rows
    TR = o_ref.shape[1]
    Cop = o_ref.shape[3]
    W = xs_ref.shape[2] - 2
    Cin = xs_ref.shape[3]
    R = 2 * TR + 1                                        # conv rows needed for TR out rows

    # Input band for this block: 2*TR + 3 padded-input rows, VMEM resident.
    band = jnp.concatenate([halo_ref[0], xs_ref[0]], axis=0)          # (2TR+3, W+2, Cin)

    # im2col: 9 shifted views concatenated on the channel axis -> ONE MXU dot (K = 9*Cin).
    taps = [band[ky:ky + R, kx:kx + W, :] for ky in range(3) for kx in range(3)]
    im = jnp.concatenate(taps, axis=-1).reshape(R * W, 9 * Cin)       # bf16
    cr = jnp.dot(im, w_ref[...], preferred_element_type=jnp.float32)  # (R*W, Cop) f32
    cr = cr.reshape(R, W, Cop)                                        # raw conv rows

    sh = sh_ref[...]
    scale = scale_ref[...]
    shift = shift_ref[...]
    first_block = pl.program_id(1) == 0

    for t in range(TR):                                   # static unroll, TR small
        top = cr[2 * t]
        if t == 0:
            # vertical reflect: global conv row -1 -> +1 (only for the first output row)
            top = jnp.where(first_block, cr[2], cr[0])
        v = top + 2.0 * cr[2 * t + 1] + cr[2 * t + 2]                 # vertical [1,2,1], f32
        z = jnp.dot(sh, v.astype(jnp.bfloat16),
                    preferred_element_type=jnp.float32)               # (Wo, Cop)
        o_ref[0, t] = z * scale + shift                               # lane-dense store


# ------------------------------------------------------------------------------------
# Wrapper (NCHW in / NCHW out).
# ------------------------------------------------------------------------------------
def _hblur_matrix(W):
    """(Wo, W) matrix: [1,2,1] horizontal blur, stride 2, reflect pad 1.  Taps exact in bf16."""
    Wo = W // 2
    S = np.zeros((Wo, W), np.float32)
    f = (1.0, 2.0, 1.0)
    for j in range(Wo):
        for kx in range(3):
            col = 2 * j + kx - 1
            if col < 0:
                col = -col                      # reflect left
            elif col >= W:
                col = 2 * W - 2 - col           # reflect right (odd-W guard)
            S[j, col] += f[kx]
    return jnp.asarray(S).astype(jnp.bfloat16)


def _pick_block_rows(Ho, max_tr):
    """Largest divisor of Ho that is <= max_tr (row-block size TR)."""
    tr = 1
    for c in range(2, max_tr + 1):
        if Ho % c == 0:
            tr = c
    return tr


def downsample_forward(x_nchw, w_im, scale_p, shift_p, cout, max_block_rows=4):
    B, Cin, H, W = x_nchw.shape
    assert H % 2 == 0 and W % 2 == 0, "even spatial dims assumed"
    Ho, Wo = H // 2, W // 2
    Cop = w_im.shape[-1]
    TR = _pick_block_rows(Ho, max_block_rows)
    NRB = Ho // TR
    R = 2 * TR + 1

    x = jnp.transpose(x_nchw, (0, 2, 3, 1))                               # NCHW -> NHWC
    # conv zero-pad (1,1) spatially + one junk top row so the band for row-block rb starts
    # at padded row 2*TR*rb (jnp.pad guarantees real zeros).
    xp = jnp.pad(x, ((0, 0), (2, 1), (1, 1), (0, 0))).astype(jnp.bfloat16)  # (B, H+3, W+2, Cin)
    xs = xp[:, 3:3 + H]                                                     # (B, H, W+2, Cin)
    # 3-row halo per block (band = halo[rb] ++ xs block rb), built once in the wrapper.
    halo = jnp.concatenate(
        [xp[:, 2 * TR * rb:2 * TR * rb + 3] for rb in range(NRB)], axis=1)  # (B, 3*NRB, W+2, Cin)
    sh = _hblur_matrix(W)

    flops = (2 * R * W * 9 * Cin * Cop            # conv im2col matmul
             + 2 * TR * Wo * W * Cop              # horizontal blur matmul
             + 3 * TR * W * Cop) * B * NRB        # vertical blur adds
    bytes_accessed = ((xs.size + halo.size + w_im.size + sh.size) * 2
                      + (scale_p.size + shift_p.size) * 4
                      + B * Ho * Wo * Cop * 4)

    out = pl.pallas_call(
        _fused_downsample_kernel,
        out_shape=jax.ShapeDtypeStruct((B, Ho, Wo, Cop), jnp.float32),
        grid=(B, NRB),
        in_specs=[
            pl.BlockSpec((1, 3, W + 2, Cin), lambda b, rb: (b, rb, 0, 0)),       # halo rows
            pl.BlockSpec((1, 2 * TR, W + 2, Cin), lambda b, rb: (b, rb, 0, 0)),  # band rows
            pl.BlockSpec((9 * Cin, Cop), lambda b, rb: (0, 0)),                  # conv weights
            pl.BlockSpec((Wo, W), lambda b, rb: (0, 0)),                         # hblur matrix
            pl.BlockSpec((1, Cop), lambda b, rb: (0, 0)),                        # fused scale
            pl.BlockSpec((1, Cop), lambda b, rb: (0, 0)),                        # fused shift
        ],
        out_specs=pl.BlockSpec((1, TR, Wo, Cop), lambda b, rb: (b, rb, 0, 0)),
        compiler_params=pltpu.CompilerParams(
            dimension_semantics=("parallel", "parallel"),
            vmem_limit_bytes=32 * 1024 * 1024),
        cost_estimate=pl.CostEstimate(flops=flops, transcendentals=0,
                                      bytes_accessed=bytes_accessed),
    )(halo, xs, w_im, sh, scale_p, shift_p)

    # TODO(synk): consumers that accept NHWC can take out[..., :cout] directly and skip
    # this transpose HBM round trip.
    return jnp.transpose(out[..., :cout], (0, 3, 1, 2))                   # NHWC -> NCHW


forward_jit = jax.jit(downsample_forward, static_argnums=(4, 5))


# ------------------------------------------------------------------------------------
# Offline parameter folding.
#   out = blur16(conv_raw) * (s1*s2/16) + (s2*((b - m1)*s1 + b1) + b2 - m2*s2)
# (blur is depthwise with weight-sum 16, so per-channel affine terms commute through it).
# Conv weights stay raw (no BN1 scale) before the bf16 cast -> better conditioning.
# ------------------------------------------------------------------------------------
def fold_params(w, b, g1, b1_, m1, v1, g2, b2_, m2, v2):
    Cout, Cin = w.shape[0], w.shape[1]
    Cop = ((Cout + 127) // 128) * 128              # lane-dense channel padding
    pad = Cop - Cout
    scale1 = g1 / jnp.sqrt(v1 + BN_EPS)
    shift1 = (b - m1) * scale1 + b1_
    scale2 = g2 / jnp.sqrt(v2 + BN_EPS)

    wt = jnp.transpose(w, (2, 3, 1, 0))                                   # (ky, kx, Cin, Cout)
    w_im = jnp.pad(wt, ((0, 0), (0, 0), (0, 0), (0, pad)))
    w_im = w_im.reshape(9 * Cin, Cop).astype(jnp.bfloat16)                # im2col K-order

    scale_out = scale1 * scale2 / 16.0
    shift_out = scale2 * shift1 + b2_ - m2 * scale2
    scale_p = jnp.pad(scale_out, (0, pad)).reshape(1, Cop).astype(jnp.float32)
    shift_p = jnp.pad(shift_out, (0, pad)).reshape(1, Cop).astype(jnp.float32)
    return w_im, scale_p, shift_p


# ------------------------------------------------------------------------------------
# Pure-JAX (XLA) reference for verification.
# ------------------------------------------------------------------------------------
def reference(x, w, b, g1, b1_, m1, v1, g2, b2_, m2, v2):
    dn = ("NCHW", "OIHW", "NCHW")
    conv = jax.lax.conv_general_dilated(
        x, w, (1, 1), ((1, 1), (1, 1)), dimension_numbers=dn,
        precision=jax.lax.Precision.HIGHEST) + b[None, :, None, None]
    s1 = g1 / jnp.sqrt(v1 + BN_EPS)
    y = (conv - m1[None, :, None, None]) * s1[None, :, None, None] + b1_[None, :, None, None]
    yp = jnp.pad(y, ((0, 0), (0, 0), (1, 1), (1, 1)), mode="reflect")
    f1 = jnp.array([1.0, 2.0, 1.0], jnp.float32)
    f2 = jnp.outer(f1, f1) / 16.0
    Cout = w.shape[0]
    bw = jnp.tile(f2[None, None], (Cout, 1, 1, 1))
    blur = jax.lax.conv_general_dilated(
        yp, bw, (2, 2), "VALID", dimension_numbers=dn,
        feature_group_count=Cout, precision=jax.lax.Precision.HIGHEST)
    s2 = g2 / jnp.sqrt(v2 + BN_EPS)
    return (blur - m2[None, :, None, None]) * s2[None, :, None, None] + b2_[None, :, None, None]


if __name__ == "__main__":
    key = jax.random.PRNGKey(0)
    ks = jax.random.split(key, 12)
    B, Cin, Cout, H, W = 2, 4, 8, 16, 16

    w = jax.random.normal(ks[0], (Cout, Cin, 3, 3), jnp.float32) * 0.1   # Conv2d weight (OIHW)
    b = jax.random.normal(ks[1], (Cout,), jnp.float32) * 0.1             # Conv2d bias
    g1 = 1.0 + 0.1 * jax.random.normal(ks[2], (Cout,), jnp.float32)       # BN1 gamma
    b1 = 0.1 * jax.random.normal(ks[3], (Cout,), jnp.float32)             # BN1 beta
    m1 = 0.1 * jax.random.normal(ks[4], (Cout,), jnp.float32)             # BN1 running_mean
    v1 = jax.random.uniform(ks[5], (Cout,), jnp.float32, 0.5, 1.5)        # BN1 running_var
    g2 = 1.0 + 0.1 * jax.random.normal(ks[6], (Cout,), jnp.float32)       # BN2 gamma
    b2 = 0.1 * jax.random.normal(ks[7], (Cout,), jnp.float32)             # BN2 beta
    m2 = 0.1 * jax.random.normal(ks[8], (Cout,), jnp.float32)             # BN2 running_mean
    v2 = jax.random.uniform(ks[9], (Cout,), jnp.float32, 0.5, 1.5)        # BN2 running_var

    w_im, scale_p, shift_p = fold_params(w, b, g1, b1, m1, v1, g2, b2, m2, v2)

    x = jax.random.normal(ks[10], (B, Cin, H, W), jnp.float32)

    out = jax.block_until_ready(forward_jit(x, w_im, scale_p, shift_p, Cout))
    assert out.shape == (B, Cout, H // 2, W // 2), out.shape

    ref = reference(x, w, b, g1, b1, m1, v1, g2, b2, m2, v2)
    max_err = float(jnp.max(jnp.abs(out - ref)))
    assert max_err < 5e-2, f"max abs error too large: {max_err}"

    print("KERNEL_OK")
</pallas_src>

<mosaic_0001>
module attributes {stable_mosaic.version = 11 : i64} {
  func.func @_fused_downsample_kernel(%arg0: i32, %arg1: i32, %arg2: memref<1x3x18x4xbf16, #tpu.memory_space<vmem>>, %arg3: memref<1x8x18x4xbf16, #tpu.memory_space<vmem>>, %arg4: memref<36x128xbf16, #tpu.memory_space<vmem>>, %arg5: memref<8x16xbf16, #tpu.memory_space<vmem>>, %arg6: memref<1x128xf32, #tpu.memory_space<vmem>>, %arg7: memref<1x128xf32, #tpu.memory_space<vmem>>, %arg8: memref<1x4x8x128xf32, #tpu.memory_space<vmem>>) attributes {dimension_semantics = [#tpu.dimension_semantics<parallel>, #tpu.dimension_semantics<parallel>], iteration_bounds = array<i64: 2, 2>, scalar_prefetch = 0 : i64, scratch_operands = 0 : i64, tpu.core_type = #tpu.core_type<tc>, window_params = [{transform_indices = @transform_0, window_bounds = array<i64: 1, 3, 18, 4>}, {transform_indices = @transform_1, window_bounds = array<i64: 1, 8, 18, 4>}, {pipeline_mode = #tpu.pipeline_mode<synchronous>, transform_indices = @transform_2, window_bounds = array<i64: 36, 128>}, {pipeline_mode = #tpu.pipeline_mode<synchronous>, transform_indices = @transform_3, window_bounds = array<i64: 8, 16>}, {pipeline_mode = #tpu.pipeline_mode<synchronous>, transform_indices = @transform_4, window_bounds = array<i64: 1, 128>}, {pipeline_mode = #tpu.pipeline_mode<synchronous>, transform_indices = @transform_5, window_bounds = array<i64: 1, 128>}, {transform_indices = @transform_6, window_bounds = array<i64: 1, 4, 8, 128>}]} {
    %c0 = arith.constant 0 : index
    %c0_0 = arith.constant 0 : index
    %c0_1 = arith.constant 0 : index
    %c0_2 = arith.constant 0 : index
    %0 = vector.load %arg2[%c0, %c0_0, %c0_1, %c0_2] : memref<1x3x18x4xbf16, #tpu.memory_space<vmem>>, vector<1x3x18x4xbf16>
    %1 = vector.shape_cast %0 : vector<1x3x18x4xbf16> to vector<3x18x4xbf16>
    %c0_3 = arith.constant 0 : index
    %c0_4 = arith.constant 0 : index
    %c0_5 = arith.constant 0 : index
    %c0_6 = arith.constant 0 : index
    %2 = vector.load %arg3[%c0_3, %c0_4, %c0_5, %c0_6] : memref<1x8x18x4xbf16, #tpu.memory_space<vmem>>, vector<1x8x18x4xbf16>
    %3 = vector.shape_cast %2 : vector<1x8x18x4xbf16> to vector<8x18x4xbf16>
    %4 = tpu.concatenate %1, %3 in 0 : vector<3x18x4xbf16>, vector<8x18x4xbf16> -> vector<11x18x4xbf16>
    %5 = vector.extract_strided_slice %4 {offsets = [0, 0, 0], sizes = [9, 16, 4], strides = [1, 1, 1]} : vector<11x18x4xbf16> to vector<9x16x4xbf16>
    %6 = vector.extract_strided_slice %4 {offsets = [0, 1, 0], sizes = [9, 16, 4], strides = [1, 1, 1]} : vector<11x18x4xbf16> to vector<9x16x4xbf16>
    %7 = vector.extract_strided_slice %4 {offsets = [0, 2, 0], sizes = [9, 16, 4], strides = [1, 1, 1]} : vector<11x18x4xbf16> to vector<9x16x4xbf16>
    %8 = vector.extract_strided_slice %4 {offsets = [1, 0, 0], sizes = [9, 16, 4], strides = [1, 1, 1]} : vector<11x18x4xbf16> to vector<9x16x4xbf16>
    %9 = vector.extract_strided_slice %4 {offsets = [1, 1, 0], sizes = [9, 16, 4], strides = [1, 1, 1]} : vector<11x18x4xbf16> to vector<9x16x4xbf16>
    %10 = vector.extract_strided_slice %4 {offsets = [1, 2, 0], sizes = [9, 16, 4], strides = [1, 1, 1]} : vector<11x18x4xbf16> to vector<9x16x4xbf16>
    %11 = vector.extract_strided_slice %4 {offsets = [2, 0, 0], sizes = [9, 16, 4], strides = [1, 1, 1]} : vector<11x18x4xbf16> to vector<9x16x4xbf16>
    %12 = vector.extract_strided_slice %4 {offsets = [2, 1, 0], sizes = [9, 16, 4], strides = [1, 1, 1]} : vector<11x18x4xbf16> to vector<9x16x4xbf16>
    %13 = vector.extract_strided_slice %4 {offsets = [2, 2, 0], sizes = [9, 16, 4], strides = [1, 1, 1]} : vector<11x18x4xbf16> to vector<9x16x4xbf16>
    %14 = tpu.concatenate %5, %6, %7, %8, %9, %10, %11, %12, %13 in 2 : vector<9x16x4xbf16>, vector<9x16x4xbf16>, vector<9x16x4xbf16>, vector<9x16x4xbf16>, vector<9x16x4xbf16>, vector<9x16x4xbf16>, vector<9x16x4xbf16>, vector<9x16x4xbf16>, vector<9x16x4xbf16> -> vector<9x16x36xbf16>
    %15 = vector.shape_cast %14 : vector<9x16x36xbf16> to vector<144x36xbf16>
    %c0_7 = arith.constant 0 : index
    %c0_8 = arith.constant 0 : index
    %16 = vector.load %arg4[%c0_7, %c0_8] : memref<36x128xbf16, #tpu.memory_space<vmem>>, vector<36x128xbf16>
    %cst = arith.constant dense<0.000000e+00> : vector<144x128xf32>
    %17 = tpu.matmul %15, %16, %cst {dimension_numbers = #tpu.dot_dimension_numbers<[1], [0], [0], [1], [0, 0, 1, 1], [], []>} : vector<144x36xbf16>, vector<36x128xbf16>, vector<144x128xf32> -> vector<144x128xf32>
    %18 = vector.shape_cast %17 : vector<144x128xf32> to vector<9x16x128xf32>
    %c0_9 = arith.constant 0 : index
    %c0_10 = arith.constant 0 : index
    %19 = vector.load %arg5[%c0_9, %c0_10] : memref<8x16xbf16, #tpu.memory_space<vmem>>, vector<8x16xbf16>
    %c0_11 = arith.constant 0 : index
    %c0_12 = arith.constant 0 : index
    %20 = vector.load %arg6[%c0_11, %c0_12] : memref<1x128xf32, #tpu.memory_space<vmem>>, vector<1x128xf32>
    %c0_13 = arith.constant 0 : index
    %c0_14 = arith.constant 0 : index
    %21 = vector.load %arg7[%c0_13, %c0_14] : memref<1x128xf32, #tpu.memory_space<vmem>>, vector<1x128xf32>
    %c0_i32 = arith.constant 0 : i32
    %22 = arith.cmpi eq, %arg1, %c0_i32 : i32
    %23 = vector.extract_strided_slice %18 {offsets = [2, 0, 0], sizes = [1, 16, 128], strides = [1, 1, 1]} : vector<9x16x128xf32> to vector<1x16x128xf32>
    %24 = vector.shape_cast %23 : vector<1x16x128xf32> to vector<16x128xf32>
    %25 = vector.extract_strided_slice %18 {offsets = [0, 0, 0], sizes = [1, 16, 128], strides = [1, 1, 1]} : vector<9x16x128xf32> to vector<1x16x128xf32>
    %26 = vector.shape_cast %25 : vector<1x16x128xf32> to vector<16x128xf32>
    %27 = arith.select %22, %24, %26 : vector<16x128xf32>
    %28 = vector.extract_strided_slice %18 {offsets = [1, 0, 0], sizes = [1, 16, 128], strides = [1, 1, 1]} : vector<9x16x128xf32> to vector<1x16x128xf32>
    %29 = vector.shape_cast %28 : vector<1x16x128xf32> to vector<16x128xf32>
    %cst_15 = arith.constant 2.000000e+00 : f32
    %30 = vector.broadcast %cst_15 : f32 to vector<16x128xf32>
    %31 = arith.mulf %30, %29 : vector<16x128xf32>
    %32 = arith.addf %27, %31 : vector<16x128xf32>
    %33 = vector.extract_strided_slice %18 {offsets = [2, 0, 0], sizes = [1, 16, 128], strides = [1, 1, 1]} : vector<9x16x128xf32> to vector<1x16x128xf32>
    %34 = vector.shape_cast %33 : vector<1x16x128xf32> to vector<16x128xf32>
    %35 = arith.addf %32, %34 : vector<16x128xf32>
    %36 = arith.truncf %35 : vector<16x128xf32> to vector<16x128xbf16>
    %cst_16 = arith.constant dense<0.000000e+00> : vector<8x128xf32>
    %37 = tpu.matmul %19, %36, %cst_16 {dimension_numbers = #tpu.dot_dimension_numbers<[1], [0], [0], [1], [0, 0, 1, 1], [], []>} : vector<8x16xbf16>, vector<16x128xbf16>, vector<8x128xf32> -> vector<8x128xf32>
    %38 = vector.broadcast %20 : vector<1x128xf32> to vector<8x128xf32>
    %39 = arith.mulf %37, %38 : vector<8x128xf32>
    %40 = vector.broadcast %21 : vector<1x128xf32> to vector<8x128xf32>
    %41 = arith.addf %39, %40 : vector<8x128xf32>
    %c0_17 = arith.constant 0 : index
    %c0_18 = arith.constant 0 : index
    %c0_19 = arith.constant 0 : index
    %c0_20 = arith.constant 0 : index
    %42 = vector.load %arg8[%c0_17, %c0_18, %c0_19, %c0_20] : memref<1x4x8x128xf32, #tpu.memory_space<vmem>>, vector<1x1x8x128xf32>
    %43 = vector.shape_cast %42 : vector<1x1x8x128xf32> to vector<8x128xf32>
    %44 = vector.shape_cast %41 : vector<8x128xf32> to vector<1x1x8x128xf32>
    tpu.vector_store %arg8[%c0_17, %c0_18, %c0_19, %c0_20], %44 {strides = array<i32>} : memref<1x4x8x128xf32, #tpu.memory_space<vmem>>, vector<1x1x8x128xf32>,
    %45 = vector.extract_strided_slice %18 {offsets = [2, 0, 0], sizes = [1, 16, 128], strides = [1, 1, 1]} : vector<9x16x128xf32> to vector<1x16x128xf32>
    %46 = vector.shape_cast %45 : vector<1x16x128xf32> to vector<16x128xf32>
    %47 = vector.extract_strided_slice %18 {offsets = [3, 0, 0], sizes = [1, 16, 128], strides = [1, 1, 1]} : vector<9x16x128xf32> to vector<1x16x128xf32>
    %48 = vector.shape_cast %47 : vector<1x16x128xf32> to vector<16x128xf32>
    %cst_21 = arith.constant 2.000000e+00 : f32
    %49 = vector.broadcast %cst_21 : f32 to vector<16x128xf32>
    %50 = arith.mulf %49, %48 : vector<16x128xf32>
    %51 = arith.addf %46, %50 : vector<16x128xf32>
    %52 = vector.extract_strided_slice %18 {offsets = [4, 0, 0], sizes = [1, 16, 128], strides = [1, 1, 1]} : vector<9x16x128xf32> to vector<1x16x128xf32>
    %53 = vector.shape_cast %52 : vector<1x16x128xf32> to vector<16x128xf32>
    %54 = arith.addf %51, %53 : vector<16x128xf32>
    %55 = arith.truncf %54 : vector<16x128xf32> to vector<16x128xbf16>
    %cst_22 = arith.constant dense<0.000000e+00> : vector<8x128xf32>
    %56 = tpu.matmul %19, %55, %cst_22 {dimension_numbers = #tpu.dot_dimension_numbers<[1], [0], [0], [1], [0, 0, 1, 1], [], []>} : vector<8x16xbf16>, vector<16x128xbf16>, vector<8x128xf32> -> vector<8x128xf32>
    %57 = vector.broadcast %20 : vector<1x128xf32> to vector<8x128xf32>
    %58 = arith.mulf %56, %57 : vector<8x128xf32>
    %59 = vector.broadcast %21 : vector<1x128xf32> to vector<8x128xf32>
    %60 = arith.addf %58, %59 : vector<8x128xf32>
    %c0_23 = arith.constant 0 : index
    %c1 = arith.constant 1 : index
    %c0_24 = arith.constant 0 : index
    %c0_25 = arith.constant 0 : index
    %61 = vector.load %arg8[%c0_23, %c1, %c0_24, %c0_25] : memref<1x4x8x128xf32, #tpu.memory_space<vmem>>, vector<1x1x8x128xf32>
    %62 = vector.shape_cast %61 : vector<1x1x8x128xf32> to vector<8x128xf32>
    %63 = vector.shape_cast %60 : vector<8x128xf32> to vector<1x1x8x128xf32>
    tpu.vector_store %arg8[%c0_23, %c1, %c0_24, %c0_25], %63 {strides = array<i32>} : memref<1x4x8x128xf32, #tpu.memory_space<vmem>>, vector<1x1x8x128xf32>,
    %64 = vector.extract_strided_slice %18 {offsets = [4, 0, 0], sizes = [1, 16, 128], strides = [1, 1, 1]} : vector<9x16x128xf32> to vector<1x16x128xf32>
    %65 = vector.shape_cast %64 : vector<1x16x128xf32> to vector<16x128xf32>
    %66 = vector.extract_strided_slice %18 {offsets = [5, 0, 0], sizes = [1, 16, 128], strides = [1, 1, 1]} : vector<9x16x128xf32> to vector<1x16x128xf32>
    %67 = vector.shape_cast %66 : vector<1x16x128xf32> to vector<16x128xf32>
    %cst_26 = arith.constant 2.000000e+00 : f32
    %68 = vector.broadcast %cst_26 : f32 to vector<16x128xf32>
    %69 = arith.mulf %68, %67 : vector<16x128xf32>
    %70 = arith.addf %65, %69 : vector<16x128xf32>
    %71 = vector.extract_strided_slice %18 {offsets = [6, 0, 0], sizes = [1, 16, 128], strides = [1, 1, 1]} : vector<9x16x128xf32> to vector<1x16x128xf32>
    %72 = vector.shape_cast %71 : vector<1x16x128xf32> to vector<16x128xf32>
    %73 = arith.addf %70, %72 : vector<16x128xf32>
    %74 = arith.truncf %73 : vector<16x128xf32> to vector<16x128xbf16>
    %cst_27 = arith.constant dense<0.000000e+00> : vector<8x128xf32>
    %75 = tpu.matmul %19, %74, %cst_27 {dimension_numbers = #tpu.dot_dimension_numbers<[1], [0], [0], [1], [0, 0, 1, 1], [], []>} : vector<8x16xbf16>, vector<16x128xbf16>, vector<8x128xf32> -> vector<8x128xf32>
    %76 = vector.broadcast %20 : vector<1x128xf32> to vector<8x128xf32>
    %77 = arith.mulf %75, %76 : vector<8x128xf32>
    %78 = vector.broadcast %21 : vector<1x128xf32> to vector<8x128xf32>
    %79 = arith.addf %77, %78 : vector<8x128xf32>
    %c0_28 = arith.constant 0 : index
    %c2 = arith.constant 2 : index
    %c0_29 = arith.constant 0 : index
    %c0_30 = arith.constant 0 : index
    %80 = vector.load %arg8[%c0_28, %c2, %c0_29, %c0_30] : memref<1x4x8x128xf32, #tpu.memory_space<vmem>>, vector<1x1x8x128xf32>
    %81 = vector.shape_cast %80 : vector<1x1x8x128xf32> to vector<8x128xf32>
    %82 = vector.shape_cast %79 : vector<8x128xf32> to vector<1x1x8x128xf32>
    tpu.vector_store %arg8[%c0_28, %c2, %c0_29, %c0_30], %82 {strides = array<i32>} : memref<1x4x8x128xf32, #tpu.memory_space<vmem>>, vector<1x1x8x128xf32>,
    %83 = vector.extract_strided_slice %18 {offsets = [6, 0, 0], sizes = [1, 16, 128], strides = [1, 1, 1]} : vector<9x16x128xf32> to vector<1x16x128xf32>
    %84 = vector.shape_cast %83 : vector<1x16x128xf32> to vector<16x128xf32>
    %85 = vector.extract_strided_slice %18 {offsets = [7, 0, 0], sizes = [1, 16, 128], strides = [1, 1, 1]} : vector<9x16x128xf32> to vector<1x16x128xf32>
    %86 = vector.shape_cast %85 : vector<1x16x128xf32> to vector<16x128xf32>
    %cst_31 = arith.constant 2.000000e+00 : f32
    %87 = vector.broadcast %cst_31 : f32 to vector<16x128xf32>
    %88 = arith.mulf %87, %86 : vector<16x128xf32>
    %89 = arith.addf %84, %88 : vector<16x128xf32>
    %90 = vector.extract_strided_slice %18 {offsets = [8, 0, 0], sizes = [1, 16, 128], strides = [1, 1, 1]} : vector<9x16x128xf32> to vector<1x16x128xf32>
    %91 = vector.shape_cast %90 : vector<1x16x128xf32> to vector<16x128xf32>
    %92 = arith.addf %89, %91 : vector<16x128xf32>
    %93 = arith.truncf %92 : vector<16x128xf32> to vector<16x128xbf16>
    %cst_32 = arith.constant dense<0.000000e+00> : vector<8x128xf32>
    %94 = tpu.matmul %19, %93, %cst_32 {dimension_numbers = #tpu.dot_dimension_numbers<[1], [0], [0], [1], [0, 0, 1, 1], [], []>} : vector<8x16xbf16>, vector<16x128xbf16>, vector<8x128xf32> -> vector<8x128xf32>
    %95 = vector.broadcast %20 : vector<1x128xf32> to vector<8x128xf32>
    %96 = arith.mulf %94, %95 : vector<8x128xf32>
    %97 = vector.broadcast %21 : vector<1x128xf32> to vector<8x128xf32>
    %98 = arith.addf %96, %97 : vector<8x128xf32>
    %c0_33 = arith.constant 0 : index
    %c3 = arith.constant 3 : index
    %c0_34 = arith.constant 0 : index
    %c0_35 = arith.constant 0 : index
    %99 = vector.load %arg8[%c0_33, %c3, %c0_34, %c0_35] : memref<1x4x8x128xf32, #tpu.memory_space<vmem>>, vector<1x1x8x128xf32>
    %100 = vector.shape_cast %99 : vector<1x1x8x128xf32> to vector<8x128xf32>
    %101 = vector.shape_cast %98 : vector<8x128xf32> to vector<1x1x8x128xf32>
    tpu.vector_store %arg8[%c0_33, %c3, %c0_34, %c0_35], %101 {strides = array<i32>} : memref<1x4x8x128xf32, #tpu.memory_space<vmem>>, vector<1x1x8x128xf32>,
    return
  }
  func.func @transform_0(%arg0: i32, %arg1: i32) -> (i32, i32, i32, i32) {
    %c0_i32 = arith.constant 0 : i32
    %c0_i32_0 = arith.constant 0 : i32
    %c0_i32_1 = arith.constant 0 : i32
    return %arg0, %arg1, %c0_i32, %c0_i32_0 : i32, i32, i32, i32
  }
  func.func @transform_1(%arg0: i32, %arg1: i32) -> (i32, i32, i32, i32) {
    %c0_i32 = arith.constant 0 : i32
    %c0_i32_0 = arith.constant 0 : i32
    %c0_i32_1 = arith.constant 0 : i32
    return %arg0, %arg1, %c0_i32, %c0_i32_0 : i32, i32, i32, i32
  }
  func.func @transform_2(%arg0: i32, %arg1: i32) -> (i32, i32) {
    %c0_i32 = arith.constant 0 : i32
    %c0_i32_0 = arith.constant 0 : i32
    %c0_i32_1 = arith.constant 0 : i32
    return %c0_i32, %c0_i32_0 : i32, i32
  }
  func.func @transform_3(%arg0: i32, %arg1: i32) -> (i32, i32) {
    %c0_i32 = arith.constant 0 : i32
    %c0_i32_0 = arith.constant 0 : i32
    %c0_i32_1 = arith.constant 0 : i32
    return %c0_i32, %c0_i32_0 : i32, i32
  }
  func.func @transform_4(%arg0: i32, %arg1: i32) -> (i32, i32) {
    %c0_i32 = arith.constant 0 : i32
    %c0_i32_0 = arith.constant 0 : i32
    %c0_i32_1 = arith.constant 0 : i32
    return %c0_i32, %c0_i32_0 : i32, i32
  }
  func.func @transform_5(%arg0: i32, %arg1: i32) -> (i32, i32) {
    %c0_i32 = arith.constant 0 : i32
    %c0_i32_0 = arith.constant 0 : i32
    %c0_i32_1 = arith.constant 0 : i32
    return %c0_i32, %c0_i32_0 : i32, i32
  }
  func.func @transform_6(%arg0: i32, %arg1: i32) -> (i32, i32, i32, i32) {
    %c0_i32 = arith.constant 0 : i32
    %c0_i32_0 = arith.constant 0 : i32
    %c0_i32_1 = arith.constant 0 : i32
    return %arg0, %arg1, %c0_i32, %c0_i32_0 : i32, i32, i32, i32
  }
}

</mosaic_0001>

<llo_original>
// kernel: downsample_forward.1
$region0: #{downsample_forward.1}
  #allocation0 [shape = 'u32[]', space=smem, size = 0x4, offset = 0x4, fixed_abs, tag = 'smem constant byte address 0x4 - core index']
  #allocation1 [shape = 'u32[144,128]{1,0:T(1,128)}', space=vmem, size = 0x12000, scoped, tag = 'internal scratch']
  %s0 = inlined_call_operand.vmem [shape: bf16[2,6,18,4], index: 0, kind: input, shape index: {}]
  %s1 = inlined_call_operand.vmem [shape: bf16[2,16,18,4], index: 1, kind: input, shape index: {}]
  %s2 = inlined_call_operand.vmem [shape: bf16[36,128], index: 2, kind: input, shape index: {}]
  %s3 = inlined_call_operand.vmem [shape: bf16[8,16], index: 3, kind: input, shape index: {}]
  %s4 = inlined_call_operand.vmem [shape: f32[1,128], index: 4, kind: input, shape index: {}]
  %s5 = inlined_call_operand.vmem [shape: f32[1,128], index: 5, kind: input, shape index: {}]
  %s6 = inlined_call_operand.vmem [shape: f32[2,8,8,128], index: 6, kind: output, shape index: {}]
  %s7 = sld [smem:[#allocation0]]
  $region57: #{downsample_forward.1} parent=0
    _
  %s9 = ssub.s32 1, %s7
  %s10 = scalar_select 0, %s9, %s7
  loop: start=0, step=1, limit=6
  $region2: #{downsample_forward.1} parent=0 // loop_pre_header
    _
  $region3: #{downsample_forward.1} parent=0 // loop_header
    %s12 = sphi 0, %s16
    %p13 = scmp.ge.s32.totalorder %s12, 6
    %s19 = sphi 0, %s31
    %s20 = sphi 0, %s27
    %s21 = sphi 0, %s19
    %s22 = sphi 0, %s20
    %s23 = sphi 0, %s21
    %s24 = sphi 0, %s22
    %s36 = sphi 0, %s38
    %s39 = sphi 0, %s36
    %s40 = sphi 0, %s39
    %s56 = sphi 0, %s40
    %s64 = sphi 0, %s66
    %s67 = sphi 0, %s64
    %s68 = sphi 0, %s67
    %s84 = sphi 0, %s68
    %s88 = sphi 0, %s88
    %s90 = sphi 0, %s88
    %s91 = sphi 0, %s90
    %s105 = sphi 0, %s91
    %s109 = sphi 0, %s109
    %s111 = sphi 0, %s109
    %s112 = sphi 0, %s111
    %s126 = sphi 0, %s112
    %s130 = sphi 0, %s130
    %s132 = sphi 0, %s130
    %s133 = sphi 0, %s132
    %s147 = sphi 0, %s133
    %s151 = sphi 0, %s151
    %s153 = sphi 0, %s151
    %s154 = sphi 0, %s153
    %s168 = sphi 0, %s154
    %s176 = sphi 0, %s178
    %s179 = sphi 0, %s176
    %s180 = sphi 0, %s179
    %s196 = sphi 0, %s180
  $region4: #{downsample_forward.1} parent=0 // loop_header_branch
    %15 = sbr.rel (%p13) target = $region8
  $region5: #{downsample_forward.1} parent=0 // loop_body
    %s17 = ssub.s32 %s12, 1
    %s18 = ssub.s32 %s12, 2
    %s25 = sadd.s32 1, %s20
    %p26 = scmp.ge.s32.totalorder %s25, 2
    %s27 = scalar_select %p26, 0, %s25
    %s28 = sadd.s32 1, %s19
    %s29 = scalar_select %p26, %s28, %s19
    %p30 = scmp.ge.s32.totalorder %s29, 2
    %s31 = scalar_select %p30, 0, %s29
    %s32 = ssub.s32 %s19, %s31
    %s33 = ssub.s32 %s20, %s27
    %s34 = sor.u32 %s32, %s33
    %p35 = scmp.eq.s32.totalorder %s34, 0
    %s37 = sadd.s32 %s36, 1
    %s38 = scalar_select %p35, %s36, %s37
    %p41 = pneg %p35
    %p42 = scmp.eq.s32.totalorder %s12, 3
    %p43 = por %p41, %p42
    %p44 = scmp.ne.s32.totalorder %s36, %s39
    %p45 = scmp.eq.s32.totalorder %s12, 0
    %p46 = por %p44, %p45
    %p47 = scmp.ne.s32.totalorder %s36, %s39
    %p48 = scmp.eq.s32.totalorder %s17, 3
    %p49 = por %p47, %p48
    %p50 = scmp.ne.s32.totalorder %s39, %s40
    %p51 = scmp.eq.s32.totalorder %s17, 0
    %p52 = por %p50, %p51
    %p53 = scmp.ne.s32.totalorder %s39, %s40
    %p54 = scmp.eq.s32.totalorder %s18, 3
    %p55 = por %p53, %p54
    %p57 = scmp.ne.s32.totalorder %s40, %s56
    %p58 = scmp.eq.s32.totalorder %s18, 0
    %p59 = por %p57, %p58
    %s60 = ssub.s32 %s19, %s31
    %s61 = ssub.s32 %s20, %s27
    %s62 = sor.u32 %s60, %s61
    %p63 = scmp.eq.s32.totalorder %s62, 0
    %s65 = sadd.s32 %s64, 1
    %s66 = scalar_select %p63, %s64, %s65
    %p69 = pneg %p63
    %p70 = scmp.eq.s32.totalorder %s12, 3
    %p71 = por %p69, %p70
    %p72 = scmp.ne.s32.totalorder %s64, %s67
    %p73 = scmp.eq.s32.totalorder %s12, 0
    %p74 = por %p72, %p73
    %p75 = scmp.ne.s32.totalorder %s64, %s67
    %p76 = scmp.eq.s32.totalorder %s17, 3
    %p77 = por %p75, %p76
    %p78 = scmp.ne.s32.totalorder %s67, %s68
    %p79 = scmp.eq.s32.totalorder %s17, 0
    %p80 = por %p78, %p79
    %p81 = scmp.ne.s32.totalorder %s67, %s68
    %p82 = scmp.eq.s32.totalorder %s18, 3
    %p83 = por %p81, %p82
    %p85 = scmp.ne.s32.totalorder %s68, %s84
    %p86 = scmp.eq.s32.totalorder %s18, 0
    %p87 = por %p85, %p86
    %s89 = sadd.s32 %s88, 1
    %p92 = scmp.eq.s32.totalorder %s12, 3
    %p93 = scmp.ne.s32.totalorder %s88, %s90
    %p94 = scmp.eq.s32.totalorder %s12, 0
    %p95 = por %p93, %p94
    %p96 = scmp.ne.s32.totalorder %s88, %s90
    %p97 = scmp.eq.s32.totalorder %s17, 3
    %p98 = por %p96, %p97
    %p99 = scmp.ne.s32.totalorder %s90, %s91
    %p100 = scmp.eq.s32.totalorder %s17, 0
    %p101 = por %p99, %p100
    %p102 = scmp.ne.s32.totalorder %s90, %s91
    %p103 = scmp.eq.s32.totalorder %s18, 3
    %p104 = por %p102, %p103
    %p106 = scmp.ne.s32.totalorder %s91, %s105
    %p107 = scmp.eq.s32.totalorder %s18, 0
    %p108 = por %p106, %p107
    %s110 = sadd.s32 %s109, 1
    %p113 = scmp.eq.s32.totalorder %s12, 3
    %p114 = scmp.ne.s32.totalorder %s109, %s111
    %p115 = scmp.eq.s32.totalorder %s12, 0
    %p116 = por %p114, %p115
    %p117 = scmp.ne.s32.totalorder %s109, %s111
    %p118 = scmp.eq.s32.totalorder %s17, 3
    %p119 = por %p117, %p118
    %p120 = scmp.ne.s32.totalorder %s111, %s112
    %p121 = scmp.eq.s32.totalorder %s17, 0
    %p122 = por %p120, %p121
    %p123 = scmp.ne.s32.totalorder %s111, %s112
    %p124 = scmp.eq.s32.totalorder %s18, 3
    %p125 = por %p123, %p124
    %p127 = scmp.ne.s32.totalorder %s112, %s126
    %p128 = scmp.eq.s32.totalorder %s18, 0
    %p129 = por %p127, %p128
    %s131 = sadd.s32 %s130, 1
    %p134 = scmp.eq.s32.totalorder %s12, 3
    %p135 = scmp.ne.s32.totalorder %s130, %s132
    %p136 = scmp.eq.s32.totalorder %s12, 0
    %p137 = por %p135, %p136
    %p138 = scmp.ne.s32.totalorder %s130, %s132
    %p139 = scmp.eq.s32.totalorder %s17, 3
    %p140 = por %p138, %p139
    %p141 = scmp.ne.s32.totalorder %s132, %s133
    %p142 = scmp.eq.s32.totalorder %s17, 0
    %p143 = por %p141, %p142
    %p144 = scmp.ne.s32.totalorder %s132, %s133
    %p145 = scmp.eq.s32.totalorder %s18, 3
    %p146 = por %p144, %p145
    %p148 = scmp.ne.s32.totalorder %s133, %s147
    %p149 = scmp.eq.s32.totalorder %s18, 0
    %p150 = por %p148, %p149
    %s152 = sadd.s32 %s151, 1
    %p155 = scmp.eq.s32.totalorder %s12, 3
    %p156 = scmp.ne.s32.totalorder %s151, %s153
    %p157 = scmp.eq.s32.totalorder %s12, 0
    %p158 = por %p156, %p157
    %p159 = scmp.ne.s32.totalorder %s151, %s153
    %p160 = scmp.eq.s32.totalorder %s17, 3
    %p161 = por %p159, %p160
    %p162 = scmp.ne.s32.totalorder %s153, %s154
    %p163 = scmp.eq.s32.totalorder %s17, 0
    %p164 = por %p162, %p163
    %p165 = scmp.ne.s32.totalorder %s153, %s154
    %p166 = scmp.eq.s32.totalorder %s18, 3
    %p167 = por %p165, %p166
    %p169 = scmp.ne.s32.totalorder %s154, %s168
    %p170 = scmp.eq.s32.totalorder %s18, 0
    %p171 = por %p169, %p170
    %s172 = ssub.s32 %s19, %s31
    %s173 = ssub.s32 %s20, %s27
    %s174 = sor.u32 %s172, %s173
    %p175 = scmp.eq.s32.totalorder %s174, 0
    %s177 = sadd.s32 %s176, 1
    %s178 = scalar_select %p175, %s176, %s177
    %p181 = pneg %p175
    %p182 = scmp.eq.s32.totalorder %s12, 3
    %p183 = por %p181, %p182
    %p184 = scmp.ne.s32.totalorder %s176, %s179
    %p185 = scmp.eq.s32.totalorder %s12, 0
    %p186 = por %p184, %p185
    %p187 = scmp.ne.s32.totalorder %s176, %s179
    %p188 = scmp.eq.s32.totalorder %s17, 3
    %p189 = por %p187, %p188
    %p190 = scmp.ne.s32.totalorder %s179, %s180
    %p191 = scmp.eq.s32.totalorder %s17, 0
    %p192 = por %p190, %p191
    %p193 = scmp.ne.s32.totalorder %s179, %s180
    %p194 = scmp.eq.s32.totalorder %s18, 3
    %p195 = por %p193, %p194
    %p197 = scmp.ne.s32.totalorder %s180, %s196
    %p198 = scmp.eq.s32.totalorder %s18, 0
    %p199 = por %p197, %p198
    %p200 = scmp.le.s32.totalorder 1, %s12
    %p201 = scmp.lt.s32.totalorder %s12, 5
    %p202 = pnand %p200, %p201
    %p203 = pneg %p202
    // Predicated region
    $region9: #{downsample_forward.1} parent=5 // pred_check
      _
    $region10: #{downsample_forward.1} parent=5 // pred_check_branch
      %205 = sbr.rel (%p202) target = $region12
    $region11: #{downsample_forward.1} parent=5 // pred_region
      %s206 = ssub.s32 %s12, 1
      // Predicated region
      $region13: #{downsample_forward.1} parent=11 // pred_check
        %p207 = pneg %p101
      $region14: #{downsample_forward.1} parent=11 // pred_check_branch
        %209 = sbr.rel (%p207) target = $region16
      $region15: #{downsample_forward.1} parent=11 // pred_region
        _
      $region16: #{downsample_forward.1} parent=11 // pred_fallthru
        _
      // Predicated region
      $region17: #{downsample_forward.1} parent=11 // pred_check
        %p210 = pneg %p122
      $region18: #{downsample_forward.1} parent=11 // pred_check_branch
        %212 = sbr.rel (%p210) target = $region20
      $region19: #{downsample_forward.1} parent=11 // pred_region
        _
      $region20: #{downsample_forward.1} parent=11 // pred_fallthru
        _
      // Predicated region
      $region21: #{downsample_forward.1} parent=11 // pred_check
        %p213 = pneg %p143
      $region22: #{downsample_forward.1} parent=11 // pred_check_branch
        %215 = sbr.rel (%p213) target = $region24
      $region23: #{downsample_forward.1} parent=11 // pred_region
        _
      $region24: #{downsample_forward.1} parent=11 // pred_fallthru
        _
      // Predicated region
      $region25: #{downsample_forward.1} parent=11 // pred_check
        %p216 = pneg %p164
      $region26: #{downsample_forward.1} parent=11 // pred_check_branch
        %218 = sbr.rel (%p216) target = $region28
      $region27: #{downsample_forward.1} parent=11 // pred_region
        _
      $region28: #{downsample_forward.1} parent=11 // pred_fallthru
        _
    $region12: #{downsample_forward.1} parent=5 // pred_fallthru
      _
    %p219 = scmp.lt.s32.totalorder %s12, 4
    // Predicated region
    $region29: #{downsample_forward.1} parent=5 // pred_check
      %p220 = pneg %p219
    $region30: #{downsample_forward.1} parent=5 // pred_check_branch
      %222 = sbr.rel (%p220) target = $region32
    $region31: #{downsample_forward.1} parent=5 // pred_region
      // Predicated region
      $region33: #{downsample_forward.1} parent=31 // pred_check
        %p223 = pneg %p46
      $region34: #{downsample_forward.1} parent=31 // pred_check_branch
        %225 = sbr.rel (%p223) target = $region36
      $region35: #{downsample_forward.1} parent=31 // pred_region
        %s226 = smul.u32 3, %s20
        %p227 = scmp.lt.s32.totalorder %s19, 1
        %s228 = scalar_select %p227, %s19, 1
        %p229 = scmp.lt.s32.totalorder %s226, 5
        %s230 = scalar_select %p229, %s226, 5
        %s231 = smul.addr %s230, 3
        %s232 = smul.addr %s228, 18
        %s233 = sadd.s32 %s231, %s232
        %s234 = smul.addr %s233, 4
        %s235 = scalar_lea.vmem %s0, %s234
        %s236 = smul.u32 3, %s20
      $region36: #{downsample_forward.1} parent=31 // pred_fallthru
        _
      // Predicated region
      $region37: #{downsample_forward.1} parent=31 // pred_check
        %p237 = pneg %p74
      $region38: #{downsample_forward.1} parent=31 // pred_check_branch
        %239 = sbr.rel (%p237) target = $region40
      $region39: #{downsample_forward.1} parent=31 // pred_region
        %s240 = smul.u32 8, %s20
        %p241 = scmp.lt.s32.totalorder %s19, 1
        %s242 = scalar_select %p241, %s19, 1
        %p243 = scmp.lt.s32.totalorder %s240, 15
        %s244 = scalar_select %p243, %s240, 15
        %s245 = smul.addr %s244, 3
        %s246 = smul.addr %s242, 48
        %s247 = sadd.s32 %s245, %s246
        %s248 = smul.addr %s247, 4
        %s249 = scalar_lea.vmem %s1, %s248
        %s250 = smul.u32 8, %s20
      $region40: #{downsample_forward.1} parent=31 // pred_fallthru
        _
    $region32: #{downsample_forward.1} parent=5 // pred_fallthru
      _
    %p251 = scmp.le.s32.totalorder 1, %s12
    %p252 = scmp.lt.s32.totalorder %s12, 5
    %p253 = pnand %p251, %p252
    %p254 = pneg %p253
    // Predicated region
    $region41: #{downsample_forward.1} parent=5 // pred_check
      _
    $region42: #{downsample_forward.1} parent=5 // pred_check_branch
      %256 = sbr.rel (%p253) target = $region44
    $region43: #{downsample_forward.1} parent=5 // pred_region
      %s257 = ssub.s32 %s12, 1
      %s258 = smul.u32 3, %s22
      %p259 = scmp.lt.s32.totalorder %s21, 1
      %s260 = scalar_select %p259, %s21, 1
      %p261 = scmp.lt.s32.totalorder %s258, 5
      %s262 = scalar_select %p261, %s258, 5
      %s263 = smul.addr %s262, 3
      %s264 = smul.addr %s260, 18
      %s265 = sadd.s32 %s263, %s264
      %s266 = smul.addr %s265, 4
      %s267 = scalar_lea.vmem %s0, %s266
      %p268 = pneg %p52
      %p269 = pneg %p49
      %s270 = smul.u32 8, %s22
      %p271 = scmp.lt.s32.totalorder %s21, 1
      %s272 = scalar_select %p271, %s21, 1
      %p273 = scmp.lt.s32.totalorder %s270, 15
      %s274 = scalar_select %p273, %s270, 15
      %s275 = smul.addr %s274, 3
      %s276 = smul.addr %s272, 48
      %s277 = sadd.s32 %s275, %s276
      %s278 = smul.addr %s277, 4
      %s279 = scalar_lea.vmem %s1, %s278
      %p280 = pneg %p80
      %p281 = pneg %p77
      %p282 = pneg %p101
      %p283 = pneg %p98
      %p284 = pneg %p122
      %p285 = pneg %p119
      %p286 = pneg %p143
      %p287 = pneg %p140
      %p288 = pneg %p164
      %p289 = pneg %p161
      %p290 = pneg %p192
      %p291 = pneg %p189
      %s292 = smul.u32 4, %s22
      %p293 = scmp.lt.s32.totalorder %s21, 1
      %s294 = scalar_select %p293, %s21, 1
      %p295 = scmp.lt.s32.totalorder %s292, 7
      %s296 = scalar_select %p295, %s292, 7
      %s297 = smul.addr %s294, 8
      %s298 = sadd.s32 %s296, %s297
      %s299 = smul.addr %s298, 8
      %s300 = scalar_lea.vmem %s6, %s299
      %s301 = smul.u32 3, %s22
      %p302 = scmp.lt.s32.totalorder %s21, 1
      %s303 = scalar_select %p302, %s21, 1
      %p304 = scmp.lt.s32.totalorder %s301, 5
      %s305 = scalar_select %p304, %s301, 5
      %s306 = smul.addr %s305, 3
      %s307 = smul.addr %s303, 18
      %s308 = sadd.s32 %s306, %s307
      %s309 = smul.addr %s308, 4
      %s310 = scalar_lea.vmem %s0, %s309
      %s311 = smul.u32 3, %s22
      %s312 = smul.u32 8, %s22
      %p313 = scmp.lt.s32.totalorder %s21, 1
      %s314 = scalar_select %p313, %s21, 1
      %p315 = scmp.lt.s32.totalorder %s312, 15
      %s316 = scalar_select %p315, %s312, 15
      %s317 = smul.addr %s316, 3
      %s318 = smul.addr %s314, 48
      %s319 = sadd.s32 %s317, %s318
      %s320 = smul.addr %s319, 4
      %s321 = scalar_lea.vmem %s1, %s320
      %s322 = smul.u32 8, %s22
      %s323 = smul.u32 4, %s22
      %p324 = scmp.lt.s32.totalorder %s21, 1
      %s325 = scalar_select %p324, %s21, 1
      %p326 = scmp.lt.s32.totalorder %s323, 7
      %s327 = scalar_select %p326, %s323, 7
      %s328 = smul.addr %s325, 8
      %s329 = sadd.s32 %s327, %s328
      %s330 = smul.addr %s329, 8
      %s331 = scalar_lea.vmem %s6, %s330
      %s332 = smul.u32 4, %s22
      %v334 = vld [vmem:[%s310] sm:$0xf]
      %v335 = vld [vmem:[%s310 + $0x4] sm:$0xf]
      %v336 = vld [vmem:[%s310 + $0x8] sm:$0x1]
      %v337 = vld [vmem:[%s310 + $0xc] sm:$0xf]
      %v338 = vld [vmem:[%s310 + $0x10] sm:$0xf]
      %v339 = vld [vmem:[%s310 + $0x14] sm:$0x1]
      %v340 = vld [vmem:[%s310 + $0x18] sm:$0xf]
      %v341 = vld [vmem:[%s310 + $0x1c] sm:$0xf]
      %v342 = vld [vmem:[%s310 + $0x20] sm:$0x1]
      %v343 = vld [vmem:[%s321] sm:$0xf]
      %v344 = vld [vmem:[%s321 + $0x4] sm:$0xf]
      %v345 = vld [vmem:[%s321 + $0x8] sm:$0x1]
      %v346 = vld [vmem:[%s321 + $0xc] sm:$0xf]
      %v347 = vld [vmem:[%s321 + $0x10] sm:$0xf]
      %v348 = vld [vmem:[%s321 + $0x14] sm:$0x1]
      %v349 = vld [vmem:[%s321 + $0x18] sm:$0xf]
      %v350 = vld [vmem:[%s321 + $0x1c] sm:$0xf]
      %v351 = vld [vmem:[%s321 + $0x20] sm:$0x1]
      %v352 = vld [vmem:[%s321 + $0x24] sm:$0xf]
      %v353 = vld [vmem:[%s321 + $0x28] sm:$0xf]
      %v354 = vld [vmem:[%s321 + $0x2c] sm:$0x1]
      %v355 = vld [vmem:[%s321 + $0x30] sm:$0xf]
      %v356 = vld [vmem:[%s321 + $0x34] sm:$0xf]
      %v357 = vld [vmem:[%s321 + $0x38] sm:$0x1]
      %v358 = vld [vmem:[%s321 + $0x3c] sm:$0xf]
      %v359 = vld [vmem:[%s321 + $0x40] sm:$0xf]
      %v360 = vld [vmem:[%s321 + $0x44] sm:$0x1]
      %v361 = vld [vmem:[%s321 + $0x48] sm:$0xf]
      %v362 = vld [vmem:[%s321 + $0x4c] sm:$0xf]
      %v363 = vld [vmem:[%s321 + $0x50] sm:$0x1]
      %v364 = vld [vmem:[%s321 + $0x54] sm:$0xf]
      %v365 = vld [vmem:[%s321 + $0x58] sm:$0xf]
      %v366 = vld [vmem:[%s321 + $0x5c] sm:$0x1]
      %v385 = vunpack.c.l.b16 %v334
      %v386 = vunpack.c.l.b16 %v335
      %v387 = vunpack.c.l.b16 %v337
      %v388 = vunpack.c.l.b16 %v338
      %v389 = vunpack.c.l.b16 %v340
      %v390 = vunpack.c.l.b16 %v341
      %v391 = vunpack.c.l.b16 %v343
      %v392 = vunpack.c.l.b16 %v344
      %v393 = vunpack.c.l.b16 %v346
      %v394 = vunpack.c.l.b16 %v347
      %v395 = vunpack.c.l.b16 %v349
      %v396 = vunpack.c.l.b16 %v350
      %v397 = vunpack.c.l.b16 %v352
      %v398 = vunpack.c.l.b16 %v353
      %v399 = vunpack.c.l.b16 %v355
      %v400 = vunpack.c.l.b16 %v356
      %v401 = vunpack.c.l.b16 %v358
      %v402 = vunpack.c.l.b16 %v359
      %v403 = vpack.c.b16 %v386, %v385
      %v404 = vpack.c.b16 %v388, %v387
      %v405 = vpack.c.b16 %v390, %v389
      %v406 = vpack.c.b16 %v392, %v391
      %v407 = vpack.c.b16 %v394, %v393
      %v408 = vpack.c.b16 %v396, %v395
      %v409 = vpack.c.b16 %v398, %v397
      %v410 = vpack.c.b16 %v400, %v399
      %v411 = vpack.c.b16 %v402, %v401
      %v421 = vunpack.c.l.b16 %v336
      %v422 = vunpack.c.l.b16 %v339
      %v423 = vunpack.c.l.b16 %v342
      %v424 = vunpack.c.l.b16 %v345
      %v425 = vunpack.c.l.b16 %v348
      %v426 = vunpack.c.l.b16 %v351
      %v427 = vunpack.c.l.b16 %v354
      %v428 = vunpack.c.l.b16 %v357
      %v429 = vunpack.c.l.b16 %v360
      %v430 = vpack.c.b16 %v421, %v421
      %v431 = vpack.c.b16 %v422, %v422
      %v432 = vpack.c.b16 %v423, %v423
      %v433 = vpack.c.b16 %v424, %v424
      %v434 = vpack.c.b16 %v425, %v425
      %v435 = vpack.c.b16 %v426, %v426
      %v436 = vpack.c.b16 %v427, %v427
      %v437 = vpack.c.b16 %v428, %v428
      %v438 = vpack.c.b16 %v429, %v429
      %vm439 = vsmask.f32 7424
      %v441 = vshrl.u32 %v403, 16
      %v443 = vshll.u32 %v403, 16
      %v445 = vrot.slane %v443, 1
      %v446 = vor.u32 %v441, %v445
      %v448 = vshll.u32 %v430, 16
      %v450 = vrot.slane %v448, 1
      %v451 = vsel %vm439, %v446, %v450
      %v453 = vshrl.u32 %v404, 16
      %v455 = vshll.u32 %v404, 16
      %v457 = vrot.slane %v455, 1
      %v458 = vor.u32 %v453, %v457
      %v460 = vshll.u32 %v431, 16
      %v462 = vrot.slane %v460, 1
      %v463 = vsel %vm439, %v458, %v462
      %v465 = vshrl.u32 %v405, 16
      %v467 = vshll.u32 %v405, 16
      %v469 = vrot.slane %v467, 1
      %v470 = vor.u32 %v465, %v469
      %v472 = vshll.u32 %v432, 16
      %v474 = vrot.slane %v472, 1
      %v475 = vsel %vm439, %v470, %v474
      %v477 = vshrl.u32 %v406, 16
      %v479 = vshll.u32 %v406, 16
      %v481 = vrot.slane %v479, 1
      %v482 = vor.u32 %v477, %v481
      %v484 = vshll.u32 %v433, 16
      %v486 = vrot.slane %v484, 1
      %v487 = vsel %vm439, %v482, %v486
      %v489 = vshrl.u32 %v407, 16
      %v491 = vshll.u32 %v407, 16
      %v493 = vrot.slane %v491, 1
      %v494 = vor.u32 %v489, %v493
      %v496 = vshll.u32 %v434, 16
      %v498 = vrot.slane %v496, 1
      %v499 = vsel %vm439, %v494, %v498
      %v501 = vshrl.u32 %v408, 16
      %v503 = vshll.u32 %v408, 16
      %v505 = vrot.slane %v503, 1
      %v506 = vor.u32 %v501, %v505
      %v508 = vshll.u32 %v435, 16
      %v510 = vrot.slane %v508, 1
      %v511 = vsel %vm439, %v506, %v510
      %v513 = vshrl.u32 %v409, 16
      %v515 = vshll.u32 %v409, 16
      %v517 = vrot.slane %v515, 1
      %v518 = vor.u32 %v513, %v517
      %v520 = vshll.u32 %v436, 16
      %v522 = vrot.slane %v520, 1
      %v523 = vsel %vm439, %v518, %v522
      %v525 = vshrl.u32 %v410, 16
      %v527 = vshll.u32 %v410, 16
      %v529 = vrot.slane %v527, 1
      %v530 = vor.u32 %v525, %v529
      %v532 = vshll.u32 %v437, 16
      %v534 = vrot.slane %v532, 1
      %v535 = vsel %vm439, %v530, %v534
      %v537 = vshrl.u32 %v411, 16
      %v539 = vshll.u32 %v411, 16
      %v541 = vrot.slane %v539, 1
      %v542 = vor.u32 %v537, %v541
      %v544 = vshll.u32 %v438, 16
      %v546 = vrot.slane %v544, 1
      %v547 = vsel %vm439, %v542, %v546
      %548 = vrot.lane.b32.xlu0 %v451, 4
      %v549 = vpop.permute.xlu0 %548
      %550 = vrot.lane.b32.xlu0 %v463, 4
      %v551 = vpop.permute.xlu0 %550
      %552 = vrot.lane.b32.xlu0 %v475, 4
      %v553 = vpop.permute.xlu0 %552
      %554 = vrot.lane.b32.xlu0 %v487, 4
      %v555 = vpop.permute.xlu0 %554
      %556 = vrot.lane.b32.xlu0 %v499, 4
      %v557 = vpop.permute.xlu0 %556
      %558 = vrot.lane.b32.xlu0 %v511, 4
      %v559 = vpop.permute.xlu0 %558
      %560 = vrot.lane.b32.xlu0 %v523, 4
      %v561 = vpop.permute.xlu0 %560
      %562 = vrot.lane.b32.xlu0 %v535, 4
      %v563 = vpop.permute.xlu0 %562
      %564 = vrot.lane.b32.xlu0 %v547, 4
      %v565 = vpop.permute.xlu0 %564
      %vm566 = vcmask 1046528
      %v567 = vrot.slane %v403, 1
      %v568 = vrot.slane %v430, 1
      %v569 = vsel %vm566, %v567, %v568
      %v570 = vrot.slane %v404, 1
      %v571 = vrot.slane %v431, 1
      %v572 = vsel %vm566, %v570, %v571
      %v573 = vrot.slane %v405, 1
      %v574 = vrot.slane %v432, 1
      %v575 = vsel %vm566, %v573, %v574
      %v576 = vrot.slane %v406, 1
      %v577 = vrot.slane %v433, 1
      %v578 = vsel %vm566, %v576, %v577
      %v579 = vrot.slane %v407, 1
      %v580 = vrot.slane %v434, 1
      %v581 = vsel %vm566, %v579, %v580
      %v582 = vrot.slane %v408, 1
      %v583 = vrot.slane %v435, 1
      %v584 = vsel %vm566, %v582, %v583
      %v585 = vrot.slane %v409, 1
      %v586 = vrot.slane %v436, 1
      %v587 = vsel %vm566, %v585, %v586
      %v588 = vrot.slane %v410, 1
      %v589 = vrot.slane %v437, 1
      %v590 = vsel %vm566, %v588, %v589
      %v591 = vrot.slane %v411, 1
      %v592 = vrot.slane %v438, 1
      %v593 = vsel %vm566, %v591, %v592
      %594 = vrot.lane.b32.xlu0 %v569, 8
      %v595 = vpop.permute.xlu0 %594
      %596 = vrot.lane.b32.xlu0 %v572, 8
      %v597 = vpop.permute.xlu0 %596
      %598 = vrot.lane.b32.xlu0 %v575, 8
      %v599 = vpop.permute.xlu0 %598
      %600 = vrot.lane.b32.xlu0 %v578, 8
      %v601 = vpop.permute.xlu0 %600
      %602 = vrot.lane.b32.xlu0 %v581, 8
      %v603 = vpop.permute.xlu0 %602
      %604 = vrot.lane.b32.xlu0 %v584, 8
      %v605 = vpop.permute.xlu0 %604
      %606 = vrot.lane.b32.xlu0 %v587, 8
      %v607 = vpop.permute.xlu0 %606
      %608 = vrot.lane.b32.xlu0 %v590, 8
      %v609 = vpop.permute.xlu0 %608
      %610 = vrot.lane.b32.xlu0 %v593, 8
      %v611 = vpop.permute.xlu0 %610
      %v614 = vunpack.c.l.b16 %v361
      %v615 = vunpack.c.l.b16 %v362
      %v616 = vpack.c.b16 %v615, %v614
      %617 = vrot.lane.b32.xlu0 %v404, 12
      %v618 = vpop.permute.xlu0 %617
      %619 = vrot.lane.b32.xlu0 %v405, 12
      %v620 = vpop.permute.xlu0 %619
      %621 = vrot.lane.b32.xlu0 %v406, 12
      %v622 = vpop.permute.xlu0 %621
      %623 = vrot.lane.b32.xlu0 %v407, 12
      %v624 = vpop.permute.xlu0 %623
      %625 = vrot.lane.b32.xlu0 %v408, 12
      %v626 = vpop.permute.xlu0 %625
      %627 = vrot.lane.b32.xlu0 %v409, 12
      %v628 = vpop.permute.xlu0 %627
      %629 = vrot.lane.b32.xlu0 %v410, 12
      %v630 = vpop.permute.xlu0 %629
      %631 = vrot.lane.b32.xlu0 %v411, 12
      %v632 = vpop.permute.xlu0 %631
      %633 = vrot.lane.b32.xlu0 %v616, 12
      %v634 = vpop.permute.xlu0 %633
      %v636 = vunpack.c.l.b16 %v363
      %v637 = vpack.c.b16 %v636, %v636
      %v639 = vshrl.u32 %v616, 16
      %v641 = vshll.u32 %v616, 16
      %v643 = vrot.slane %v641, 1
      %v644 = vor.u32 %v639, %v643
      %v646 = vshll.u32 %v637, 16
      %v648 = vrot.slane %v646, 1
      %v649 = vsel %vm439, %v644, %v648
      %650 = vrot.lane.b32.xlu0 %v463, 16
      %v651 = vpop.permute.xlu0 %650
      %652 = vrot.lane.b32.xlu0 %v475, 16
      %v653 = vpop.permute.xlu0 %652
      %654 = vrot.lane.b32.xlu0 %v487, 16
      %v655 = vpop.permute.xlu0 %654
      %656 = vrot.lane.b32.xlu0 %v499, 16
      %v657 = vpop.permute.xlu0 %656
      %658 = vrot.lane.b32.xlu0 %v511, 16
      %v659 = vpop.permute.xlu0 %658
      %660 = vrot.lane.b32.xlu0 %v523, 16
      %v661 = vpop.permute.xlu0 %660
      %662 = vrot.lane.b32.xlu0 %v535, 16
      %v663 = vpop.permute.xlu0 %662
      %664 = vrot.lane.b32.xlu0 %v547, 16
      %v665 = vpop.permute.xlu0 %664
      %666 = vrot.lane.b32.xlu0 %v649, 16
      %v667 = vpop.permute.xlu0 %666
      %v668 = vrot.slane %v616, 1
      %v669 = vrot.slane %v637, 1
      %v670 = vsel %vm566, %v668, %v669
      %671 = vrot.lane.b32.xlu0 %v572, 20
      %v672 = vpop.permute.xlu0 %671
      %673 = vrot.lane.b32.xlu0 %v575, 20
      %v674 = vpop.permute.xlu0 %673
      %675 = vrot.lane.b32.xlu0 %v578, 20
      %v676 = vpop.permute.xlu0 %675
      %677 = vrot.lane.b32.xlu0 %v581, 20
      %v678 = vpop.permute.xlu0 %677
      %679 = vrot.lane.b32.xlu0 %v584, 20
      %v680 = vpop.permute.xlu0 %679
      %681 = vrot.lane.b32.xlu0 %v587, 20
      %v682 = vpop.permute.xlu0 %681
      %683 = vrot.lane.b32.xlu0 %v590, 20
      %v684 = vpop.permute.xlu0 %683
      %685 = vrot.lane.b32.xlu0 %v593, 20
      %v686 = vpop.permute.xlu0 %685
      %687 = vrot.lane.b32.xlu0 %v670, 20
      %v688 = vpop.permute.xlu0 %687
      %v691 = vunpack.c.l.b16 %v364
      %v692 = vunpack.c.l.b16 %v365
      %v693 = vpack.c.b16 %v692, %v691
      %694 = vrot.lane.b32.xlu0 %v405, 24
      %v695 = vpop.permute.xlu0 %694
      %696 = vrot.lane.b32.xlu0 %v406, 24
      %v697 = vpop.permute.xlu0 %696
      %698 = vrot.lane.b32.xlu0 %v407, 24
      %v699 = vpop.permute.xlu0 %698
      %700 = vrot.lane.b32.xlu0 %v408, 24
      %v701 = vpop.permute.xlu0 %700
      %702 = vrot.lane.b32.xlu0 %v409, 24
      %v703 = vpop.permute.xlu0 %702
      %704 = vrot.lane.b32.xlu0 %v410, 24
      %v705 = vpop.permute.xlu0 %704
      %706 = vrot.lane.b32.xlu0 %v411, 24
      %v707 = vpop.permute.xlu0 %706
      %708 = vrot.lane.b32.xlu0 %v616, 24
      %v709 = vpop.permute.xlu0 %708
      %710 = vrot.lane.b32.xlu0 %v693, 24
      %v711 = vpop.permute.xlu0 %710
      %v713 = vunpack.c.l.b16 %v366
      %v714 = vpack.c.b16 %v713, %v713
      %v716 = vshrl.u32 %v693, 16
      %v718 = vshll.u32 %v693, 16
      %v720 = vrot.slane %v718, 1
      %v721 = vor.u32 %v716, %v720
      %v723 = vshll.u32 %v714, 16
      %v725 = vrot.slane %v723, 1
      %v726 = vsel %vm439, %v721, %v725
      %727 = vrot.lane.b32.xlu0 %v475, 28
      %v728 = vpop.permute.xlu0 %727
      %729 = vrot.lane.b32.xlu0 %v487, 28
      %v730 = vpop.permute.xlu0 %729
      %731 = vrot.lane.b32.xlu0 %v499, 28
      %v732 = vpop.permute.xlu0 %731
      %733 = vrot.lane.b32.xlu0 %v511, 28
      %v734 = vpop.permute.xlu0 %733
      %735 = vrot.lane.b32.xlu0 %v523, 28
      %v736 = vpop.permute.xlu0 %735
      %737 = vrot.lane.b32.xlu0 %v535, 28
      %v738 = vpop.permute.xlu0 %737
      %739 = vrot.lane.b32.xlu0 %v547, 28
      %v740 = vpop.permute.xlu0 %739
      %741 = vrot.lane.b32.xlu0 %v649, 28
      %v742 = vpop.permute.xlu0 %741
      %743 = vrot.lane.b32.xlu0 %v726, 28
      %v744 = vpop.permute.xlu0 %743
      %v745 = vrot.slane %v693, 1
      %v746 = vrot.slane %v714, 1
      %v747 = vsel %vm566, %v745, %v746
      %748 = vrot.lane.b32.xlu0 %v575, 32
      %v749 = vpop.permute.xlu0 %748
      %750 = vrot.lane.b32.xlu0 %v578, 32
      %v751 = vpop.permute.xlu0 %750
      %752 = vrot.lane.b32.xlu0 %v581, 32
      %v753 = vpop.permute.xlu0 %752
      %754 = vrot.lane.b32.xlu0 %v584, 32
      %v755 = vpop.permute.xlu0 %754
      %756 = vrot.lane.b32.xlu0 %v587, 32
      %v757 = vpop.permute.xlu0 %756
      %758 = vrot.lane.b32.xlu0 %v590, 32
      %v759 = vpop.permute.xlu0 %758
      %760 = vrot.lane.b32.xlu0 %v593, 32
      %v761 = vpop.permute.xlu0 %760
      %762 = vrot.lane.b32.xlu0 %v670, 32
      %v763 = vpop.permute.xlu0 %762
      %764 = vrot.lane.b32.xlu0 %v747, 32
      %v765 = vpop.permute.xlu0 %764
      %vm766 = vcmask 31744
      %v768 = vsel %vm766, %v403, %v549
      %v770 = vsel %vm766, %v404, %v551
      %v772 = vsel %vm766, %v405, %v553
      %v774 = vsel %vm766, %v406, %v555
      %v776 = vsel %vm766, %v407, %v557
      %v778 = vsel %vm766, %v408, %v559
      %v780 = vsel %vm766, %v409, %v561
      %v782 = vsel %vm766, %v410, %v563
      %v784 = vsel %vm766, %v411, %v565
      %vm785 = vcmask 64512
      %v787 = vsel %vm785, %v768, %v595
      %v789 = vsel %vm785, %v770, %v597
      %v791 = vsel %vm785, %v772, %v599
      %v793 = vsel %vm785, %v774, %v601
      %v795 = vsel %vm785, %v776, %v603
      %v797 = vsel %vm785, %v778, %v605
      %v799 = vsel %vm785, %v780, %v607
      %v801 = vsel %vm785, %v782, %v609
      %v803 = vsel %vm785, %v784, %v611
      %vm804 = vcmask 97280
      %v806 = vsel %vm804, %v787, %v618
      %v808 = vsel %vm804, %v789, %v620
      %v810 = vsel %vm804, %v791, %v622
      %v812 = vsel %vm804, %v793, %v624
      %v814 = vsel %vm804, %v795, %v626
      %v816 = vsel %vm804, %v797, %v628
      %v818 = vsel %vm804, %v799, %v630
      %v820 = vsel %vm804, %v801, %v632
      %v822 = vsel %vm804, %v803, %v634
      %vm823 = vcmask 130048
      %v825 = vsel %vm823, %v806, %v651
      %v827 = vsel %vm823, %v808, %v653
      %v829 = vsel %vm823, %v810, %v655
      %v831 = vsel %vm823, %v812, %v657
      %v833 = vsel %vm823, %v814, %v659
      %v835 = vsel %vm823, %v816, %v661
      %v837 = vsel %vm823, %v818, %v663
      %v839 = vsel %vm823, %v820, %v665
      %v841 = vsel %vm823, %v822, %v667
      %vm842 = vcmask 162816
      %v844 = vsel %vm842, %v825, %v672
      %v846 = vsel %vm842, %v827, %v674
      %v848 = vsel %vm842, %v829, %v676
      %v850 = vsel %vm842, %v831, %v678
      %v852 = vsel %vm842, %v833, %v680
      %v854 = vsel %vm842, %v835, %v682
      %v856 = vsel %vm842, %v837, %v684
      %v858 = vsel %vm842, %v839, %v686
      %v860 = vsel %vm842, %v841, %v688
      %vm861 = vcmask 195584
      %v863 = vsel %vm861, %v844, %v695
      %v865 = vsel %vm861, %v846, %v697
      %v867 = vsel %vm861, %v848, %v699
      %v869 = vsel %vm861, %v850, %v701
      %v871 = vsel %vm861, %v852, %v703
      %v873 = vsel %vm861, %v854, %v705
      %v875 = vsel %vm861, %v856, %v707
      %v877 = vsel %vm861, %v858, %v709
      %v879 = vsel %vm861, %v860, %v711
      %vm880 = vcmask 228352
      %v882 = vsel %vm880, %v863, %v728
      %v884 = vsel %vm880, %v865, %v730
      %v886 = vsel %vm880, %v867, %v732
      %v888 = vsel %vm880, %v869, %v734
      %v890 = vsel %vm880, %v871, %v736
      %v892 = vsel %vm880, %v873, %v738
      %v894 = vsel %vm880, %v875, %v740
      %v896 = vsel %vm880, %v877, %v742
      %v898 = vsel %vm880, %v879, %v744
      %vm899 = vcmask 261120
      %v901 = vsel %vm899, %v882, %v749
      %v903 = vsel %vm899, %v884, %v751
      %v905 = vsel %vm899, %v886, %v753
      %v907 = vsel %vm899, %v888, %v755
      %v909 = vsel %vm899, %v890, %v757
      %v911 = vsel %vm899, %v892, %v759
      %v913 = vsel %vm899, %v894, %v761
      %v915 = vsel %vm899, %v896, %v763
      %v917 = vsel %vm899, %v898, %v765
      %v918 = vld [vmem:[%s2] sm:$0xf]
      %v919 = vld [vmem:[%s2 + $0x4] sm:$0xf]
      %v920 = vld [vmem:[%s2 + $0x8] sm:$0xf]
      %v921 = vld [vmem:[%s2 + $0xc] sm:$0xf]
      %v922 = vld [vmem:[%s2 + $0x10] sm:$0x3]
      %v928 = vunpack.c.l.b16 %v918
      %v929 = vunpack.c.l.b16 %v919
      %v930 = vunpack.c.l.b16 %v920
      %v931 = vunpack.c.l.b16 %v921
      %v932 = vunpack.c.l.b16 %v922
      %v933 = vpack.c.b16 %v929, %v928
      %v934 = vpack.c.b16 %v931, %v930
      %v935 = vpack.c.b16 %v932, %v932
      %vm938 = vcmask 293888
      %v939 = vsel %vm938, %v901, 0
      %v941 = vsel %vm938, %v903, 0
      %v943 = vsel %vm938, %v905, 0
      %v945 = vsel %vm938, %v907, 0
      %v947 = vsel %vm938, %v909, 0
      %v949 = vsel %vm938, %v911, 0
      %v951 = vsel %vm938, %v913, 0
      %v953 = vsel %vm938, %v915, 0
      %v955 = vsel %vm938, %v917, 0
      %vm957 = vcmask 1041408
      %v959 = vsel %vm957, %v935, 0
      %961 = vmatprep.subr.bf16.mxu0 0
      %962 = vmatpush1.bf16.msra.mxu0 %v933
      %963 = vmatprep.subr.bf16.mxu0 0
      %964 = vmatpush1.bf16.msra.mxu0 %v934
      %965 = vmatprep.subr.bf16.mxu0 0
      %966 = vmatpush1.bf16.msra.mxu0 %v959
      %967 = vmatprep.subr.bf16.mxu0 0
      %968 = vmatpush1.bf16.msra.mxu0 0
      %969 = vmatprep.subr.bf16.mxu0 0
      %970 = vmatpush1.bf16.msra.mxu0 0
      %971 = vmatprep.subr.bf16.mxu0 0
      %972 = vmatpush1.bf16.msra.mxu0 0
      %973 = vmatprep.subr.bf16.mxu0 0
      %974 = vmatpush1.bf16.msra.mxu0 0
      %975 = vmatprep.subr.bf16.mxu0 0
      %976 = vmatpush1.bf16.msra.mxu0 0
      %977 = vmatprep.subr.bf16.mxu0 0
      %978 = vmatpush1.bf16.msra.mxu0 0
      %979 = vmatprep.subr.bf16.mxu0 0
      %980 = vmatpush1.bf16.msra.mxu0 0
      %981 = vmatprep.subr.bf16.mxu0 0
      %982 = vmatpush1.bf16.msra.mxu0 0
      %983 = vmatprep.subr.bf16.mxu0 0
      %984 = vmatpush1.bf16.msra.mxu0 0
      %985 = vmatprep.subr.bf16.mxu0 0
      %986 = vmatpush1.bf16.msra.mxu0 0
      %987 = vmatprep.subr.bf16.mxu0 0
      %988 = vmatpush1.bf16.msra.mxu0 0
      %989 = vmatprep.subr.bf16.mxu0 0
      %990 = vmatpush1.bf16.msra.mxu0 0
      %991 = vmatprep.subr.bf16.mxu0 0
      %992 = vmatpush1.bf16.msra.mxu0 0
      %993 = vmatprep.mubr.bf16.mxu0 0
      %994 = vmatmul.mubr.bf16.gmra.mrb[0].mxu0 %v939
      %v995 = vpop.f32.mrb[0].mxu0
      %v996 = vadd.f32 0.0, %v995
      %v997 = vpop.f32.mrb[0].mxu0
      %v998 = vpop.f32.mrb[0].mxu0
      %v999 = vadd.f32 0.0, %v998
      %v1000 = vpop.f32.mrb[0].mxu0
      %1001 = vmatprep.mubr.bf16.mxu0 0
      %1002 = vmatmul.mubr.bf16.gmra.mrb[0].mxu0 %v941
      %v1003 = vpop.f32.mrb[0].mxu0
      %v1004 = vadd.f32 0.0, %v1003
      %v1005 = vpop.f32.mrb[0].mxu0
      %v1006 = vpop.f32.mrb[0].mxu0
      %v1007 = vadd.f32 0.0, %v1006
      %v1008 = vpop.f32.mrb[0].mxu0
      %1009 = vmatprep.mubr.bf16.mxu0 0
      %1010 = vmatmul.mubr.bf16.gmra.mrb[0].mxu0 %v943
      %v1011 = vpop.f32.mrb[0].mxu0
      %v1012 = vadd.f32 0.0, %v1011
      %v1013 = vpop.f32.mrb[0].mxu0
      %v1014 = vpop.f32.mrb[0].mxu0
      %v1015 = vadd.f32 0.0, %v1014
      %v1016 = vpop.f32.mrb[0].mxu0
      %1017 = vmatprep.mubr.bf16.mxu0 0
      %1018 = vmatmul.mubr.bf16.gmra.mrb[0].mxu0 %v945
      %v1019 = vpop.f32.mrb[0].mxu0
      %v1020 = vadd.f32 0.0, %v1019
      %v1021 = vpop.f32.mrb[0].mxu0
      %v1022 = vpop.f32.mrb[0].mxu0
      %v1023 = vadd.f32 0.0, %v1022
      %v1024 = vpop.f32.mrb[0].mxu0
      %1025 = vmatprep.mubr.bf16.mxu0 0
      %1026 = vmatmul.mubr.bf16.gmra.mrb[0].mxu0 %v947
      %v1027 = vpop.f32.mrb[0].mxu0
      %v1028 = vadd.f32 0.0, %v1027
      %v1029 = vpop.f32.mrb[0].mxu0
      %v1030 = vpop.f32.mrb[0].mxu0
      %v1031 = vadd.f32 0.0, %v1030
      %v1032 = vpop.f32.mrb[0].mxu0
      %1033 = vmatprep.mubr.bf16.mxu0 0
      %1034 = vmatmul.mubr.bf16.gmra.mrb[0].mxu0 %v949
      %v1035 = vpop.f32.mrb[0].mxu0
      %v1036 = vadd.f32 0.0, %v1035
      %v1037 = vpop.f32.mrb[0].mxu0
      %v1038 = vpop.f32.mrb[0].mxu0
      %v1039 = vadd.f32 0.0, %v1038
      %v1040 = vpop.f32.mrb[0].mxu0
      %1041 = vmatprep.mubr.bf16.mxu0 0
      %1042 = vmatmul.mubr.bf16.gmra.mrb[0].mxu0 %v951
      %v1043 = vpop.f32.mrb[0].mxu0
      %v1044 = vadd.f32 0.0, %v1043
      %v1045 = vpop.f32.mrb[0].mxu0
      %v1046 = vpop.f32.mrb[0].mxu0
      %v1047 = vadd.f32 0.0, %v1046
      %v1048 = vpop.f32.mrb[0].mxu0
      %1049 = vmatprep.mubr.bf16.mxu0 0
      %1050 = vmatmul.mubr.bf16.gmra.mrb[0].mxu0 %v953
      %v1051 = vpop.f32.mrb[0].mxu0
      %v1052 = vadd.f32 0.0, %v1051
      %v1053 = vpop.f32.mrb[0].mxu0
      %v1054 = vpop.f32.mrb[0].mxu0
      %v1055 = vadd.f32 0.0, %v1054
      %v1056 = vpop.f32.mrb[0].mxu0
      %1057 = vmatprep.mubr.bf16.mxu0 0
      %1058 = vmatmul.mubr.bf16.gmra.mrb[0].mxu0 %v955
      %v1059 = vpop.f32.mrb[0].mxu0
      %v1060 = vadd.f32 0.0, %v1059
      %v1061 = vpop.f32.mrb[0].mxu0
      %v1062 = vpop.f32.mrb[0].mxu0
      %v1063 = vadd.f32 0.0, %v1062
      %v1064 = vpop.f32.mrb[0].mxu0
      %1065 = vdwg.mxu0
      %v1066 = vld [vmem:[%s3] sm:$0xf]
      %v1067 = vld [vmem:[%s4] sm:$0x1]
      %v1068 = vld [vmem:[%s5] sm:$0x1]
      %p1069 = scmp.eq.s32.totalorder %s22, 0
      %s1070 = scalar_select %p1069, 1, 0
      %v1071 = vstv %s1070
      %vm1072 = vcmp.eq.s32.totalorder %v1071, 1
      %v1073 = vsel %vm1072, %v1012, %v996
      %v1074 = vsel %vm1072, %v1015, %v999
      %v1075 = vmul.f32 %v1004, 2.0
      %v1076 = vmul.f32 %v1007, 2.0
      %v1077 = vadd.f32 %v1073, %v1075
      %v1078 = vadd.f32 %v1074, %v1076
      %v1079 = vadd.f32 %v1077, %v1012
      %v1080 = vadd.f32 %v1078, %v1015
      %v1081 = vpack.c.bf16 %v1080, %v1079
      %v1083 = vsel %vm823, %v1066, 0
      %1085 = vmatprep.subr.bf16.mxu0 0
      %1086 = vmatpush1.bf16.msra.mxu0 %v1081
      %1087 = vmatprep.subr.bf16.mxu0 0
      %1088 = vmatpush1.bf16.msra.mxu0 0
      %1089 = vmatprep.subr.bf16.mxu0 0
      %1090 = vmatpush1.bf16.msra.mxu0 0
      %1091 = vmatprep.subr.bf16.mxu0 0
      %1092 = vmatpush1.bf16.msra.mxu0 0
      %1093 = vmatprep.subr.bf16.mxu0 0
      %1094 = vmatpush1.bf16.msra.mxu0 0
      %1095 = vmatprep.subr.bf16.mxu0 0
      %1096 = vmatpush1.bf16.msra.mxu0 0
      %1097 = vmatprep.subr.bf16.mxu0 0
      %1098 = vmatpush1.bf16.msra.mxu0 0
      %1099 = vmatprep.subr.bf16.mxu0 0
      %1100 = vmatpush1.bf16.msra.mxu0 0
      %1101 = vmatprep.subr.bf16.mxu0 0
      %1102 = vmatpush1.bf16.msra.mxu0 0
      %1103 = vmatprep.subr.bf16.mxu0 0
      %1104 = vmatpush1.bf16.msra.mxu0 0
      %1105 = vmatprep.subr.bf16.mxu0 0
      %1106 = vmatpush1.bf16.msra.mxu0 0
      %1107 = vmatprep.subr.bf16.mxu0 0
      %1108 = vmatpush1.bf16.msra.mxu0 0
      %1109 = vmatprep.subr.bf16.mxu0 0
      %1110 = vmatpush1.bf16.msra.mxu0 0
      %1111 = vmatprep.subr.bf16.mxu0 0
      %1112 = vmatpush1.bf16.msra.mxu0 0
      %1113 = vmatprep.subr.bf16.mxu0 0
      %1114 = vmatpush1.bf16.msra.mxu0 0
      %1115 = vmatprep.subr.bf16.mxu0 0
      %1116 = vmatpush1.bf16.msra.mxu0 0
      %1117 = vmatprep.mubr.bf16.mxu0 0
      %1118 = vmatmul.mubr.bf16.gmra.mrb[0].mxu0 %v1083
      %v1119 = vpop.f32.mrb[0].mxu0
      %v1120 = vadd.f32 0.0, %v1119
      %v1121 = vpop.f32.mrb[0].mxu0
      %v1122 = vpop.f32.mrb[0].mxu0
      %v1123 = vpop.f32.mrb[0].mxu0
      %1124 = vdwg.mxu0
      %v1126 = vlaneseq
      %v1127 = vshrl.u32 %v1126, 7
      %v1128 = vsub.s32 0, %v1127
      %v1129 = vrot.slane %v1067, %v1128
      %v1131 = vmul.f32 %v1120, %v1129
      %v1133 = vlaneseq
      %v1134 = vshrl.u32 %v1133, 7
      %v1135 = vsub.s32 0, %v1134
      %v1136 = vrot.slane %v1068, %v1135
      %v1138 = vadd.f32 %v1131, %v1136
      %1139 = vst [vmem:[%s331] sm:$0xff] %v1138
      %v1140 = vmul.f32 %v1020, 2.0
      %v1141 = vmul.f32 %v1023, 2.0
      %v1142 = vadd.f32 %v1012, %v1140
      %v1143 = vadd.f32 %v1015, %v1141
      %v1144 = vadd.f32 %v1142, %v1028
      %v1145 = vadd.f32 %v1143, %v1031
      %v1146 = vpack.c.bf16 %v1145, %v1144
      %1147 = vmatprep.subr.bf16.mxu0 0
      %1148 = vmatpush1.bf16.msra.mxu0 %v1146
      %1149 = vmatprep.subr.bf16.mxu0 0
      %1150 = vmatpush1.bf16.msra.mxu0 0
      %1151 = vmatprep.subr.bf16.mxu0 0
      %1152 = vmatpush1.bf16.msra.mxu0 0
      %1153 = vmatprep.subr.bf16.mxu0 0
      %1154 = vmatpush1.bf16.msra.mxu0 0
      %1155 = vmatprep.subr.bf16.mxu0 0
      %1156 = vmatpush1.bf16.msra.mxu0 0
      %1157 = vmatprep.subr.bf16.mxu0 0
      %1158 = vmatpush1.bf16.msra.mxu0 0
      %1159 = vmatprep.subr.bf16.mxu0 0
      %1160 = vmatpush1.bf16.msra.mxu0 0
      %1161 = vmatprep.subr.bf16.mxu0 0
      %1162 = vmatpush1.bf16.msra.mxu0 0
      %1163 = vmatprep.subr.bf16.mxu0 0
      %1164 = vmatpush1.bf16.msra.mxu0 0
      %1165 = vmatprep.subr.bf16.mxu0 0
      %1166 = vmatpush1.bf16.msra.mxu0 0
      %1167 = vmatprep.subr.bf16.mxu0 0
      %1168 = vmatpush1.bf16.msra.mxu0 0
      %1169 = vmatprep.subr.bf16.mxu0 0
      %1170 = vmatpush1.bf16.msra.mxu0 0
      %1171 = vmatprep.subr.bf16.mxu0 0
      %1172 = vmatpush1.bf16.msra.mxu0 0
      %1173 = vmatprep.subr.bf16.mxu0 0
      %1174 = vmatpush1.bf16.msra.mxu0 0
      %1175 = vmatprep.subr.bf16.mxu0 0
      %1176 = vmatpush1.bf16.msra.mxu0 0
      %1177 = vmatprep.subr.bf16.mxu0 0
      %1178 = vmatpush1.bf16.msra.mxu0 0
      %1179 = vmatprep.mubr.bf16.mxu0 0
      %1180 = vmatmul.mubr.bf16.gmra.mrb[0].mxu0 %v1083
      %v1181 = vpop.f32.mrb[0].mxu0
      %v1182 = vadd.f32 0.0, %v1181
      %v1183 = vpop.f32.mrb[0].mxu0
      %v1184 = vpop.f32.mrb[0].mxu0
      %v1185 = vpop.f32.mrb[0].mxu0
      %1186 = vdwg.mxu0
      %v1187 = vmul.f32 %v1182, %v1129
      %v1188 = vadd.f32 %v1187, %v1136
      %s1189 = scalar_lea.vmem %s331, 8
      %1190 = vst [vmem:[%s1189] sm:$0xff] %v1188
      %v1191 = vmul.f32 %v1036, 2.0
      %v1192 = vmul.f32 %v1039, 2.0
      %v1193 = vadd.f32 %v1028, %v1191
      %v1194 = vadd.f32 %v1031, %v1192
      %v1195 = vadd.f32 %v1193, %v1044
      %v1196 = vadd.f32 %v1194, %v1047
      %v1197 = vpack.c.bf16 %v1196, %v1195
      %1198 = vmatprep.subr.bf16.mxu0 0
      %1199 = vmatpush1.bf16.msra.mxu0 %v1197
      %1200 = vmatprep.subr.bf16.mxu0 0
      %1201 = vmatpush1.bf16.msra.mxu0 0
      %1202 = vmatprep.subr.bf16.mxu0 0
      %1203 = vmatpush1.bf16.msra.mxu0 0
      %1204 = vmatprep.subr.bf16.mxu0 0
      %1205 = vmatpush1.bf16.msra.mxu0 0
      %1206 = vmatprep.subr.bf16.mxu0 0
      %1207 = vmatpush1.bf16.msra.mxu0 0
      %1208 = vmatprep.subr.bf16.mxu0 0
      %1209 = vmatpush1.bf16.msra.mxu0 0
      %1210 = vmatprep.subr.bf16.mxu0 0
      %1211 = vmatpush1.bf16.msra.mxu0 0
      %1212 = vmatprep.subr.bf16.mxu0 0
      %1213 = vmatpush1.bf16.msra.mxu0 0
      %1214 = vmatprep.subr.bf16.mxu0 0
      %1215 = vmatpush1.bf16.msra.mxu0 0
      %1216 = vmatprep.subr.bf16.mxu0 0
      %1217 = vmatpush1.bf16.msra.mxu0 0
      %1218 = vmatprep.subr.bf16.mxu0 0
      %1219 = vmatpush1.bf16.msra.mxu0 0
      %1220 = vmatprep.subr.bf16.mxu0 0
      %1221 = vmatpush1.bf16.msra.mxu0 0
      %1222 = vmatprep.subr.bf16.mxu0 0
      %1223 = vmatpush1.bf16.msra.mxu0 0
      %1224 = vmatprep.subr.bf16.mxu0 0
      %1225 = vmatpush1.bf16.msra.mxu0 0
      %1226 = vmatprep.subr.bf16.mxu0 0
      %1227 = vmatpush1.bf16.msra.mxu0 0
      %1228 = vmatprep.subr.bf16.mxu0 0
      %1229 = vmatpush1.bf16.msra.mxu0 0
      %1230 = vmatprep.mubr.bf16.mxu0 0
      %1231 = vmatmul.mubr.bf16.gmra.mrb[0].mxu0 %v1083
      %v1232 = vpop.f32.mrb[0].mxu0
      %v1233 = vadd.f32 0.0, %v1232
      %v1234 = vpop.f32.mrb[0].mxu0
      %v1235 = vpop.f32.mrb[0].mxu0
      %v1236 = vpop.f32.mrb[0].mxu0
      %1237 = vdwg.mxu0
      %v1238 = vmul.f32 %v1233, %v1129
      %v1239 = vadd.f32 %v1238, %v1136
      %s1240 = scalar_lea.vmem %s331, 16
      %1241 = vst [vmem:[%s1240] sm:$0xff] %v1239
      %v1242 = vmul.f32 %v1052, 2.0
      %v1243 = vmul.f32 %v1055, 2.0
      %v1244 = vadd.f32 %v1044, %v1242
      %v1245 = vadd.f32 %v1047, %v1243
      %v1246 = vadd.f32 %v1244, %v1060
      %v1247 = vadd.f32 %v1245, %v1063
      %v1248 = vpack.c.bf16 %v1247, %v1246
      %1249 = vmatprep.subr.bf16.mxu0 0
      %1250 = vmatpush1.bf16.msra.mxu0 %v1248
      %1251 = vmatprep.subr.bf16.mxu0 0
      %1252 = vmatpush1.bf16.msra.mxu0 0
      %1253 = vmatprep.subr.bf16.mxu0 0
      %1254 = vmatpush1.bf16.msra.mxu0 0
      %1255 = vmatprep.subr.bf16.mxu0 0
      %1256 = vmatpush1.bf16.msra.mxu0 0
      %1257 = vmatprep.subr.bf16.mxu0 0
      %1258 = vmatpush1.bf16.msra.mxu0 0
      %1259 = vmatprep.subr.bf16.mxu0 0
      %1260 = vmatpush1.bf16.msra.mxu0 0
      %1261 = vmatprep.subr.bf16.mxu0 0
      %1262 = vmatpush1.bf16.msra.mxu0 0
      %1263 = vmatprep.subr.bf16.mxu0 0
      %1264 = vmatpush1.bf16.msra.mxu0 0
      %1265 = vmatprep.subr.bf16.mxu0 0
      %1266 = vmatpush1.bf16.msra.mxu0 0
      %1267 = vmatprep.subr.bf16.mxu0 0
      %1268 = vmatpush1.bf16.msra.mxu0 0
      %1269 = vmatprep.subr.bf16.mxu0 0
      %1270 = vmatpush1.bf16.msra.mxu0 0
      %1271 = vmatprep.subr.bf16.mxu0 0
      %1272 = vmatpush1.bf16.msra.mxu0 0
      %1273 = vmatprep.subr.bf16.mxu0 0
      %1274 = vmatpush1.bf16.msra.mxu0 0
      %1275 = vmatprep.subr.bf16.mxu0 0
      %1276 = vmatpush1.bf16.msra.mxu0 0
      %1277 = vmatprep.subr.bf16.mxu0 0
      %1278 = vmatpush1.bf16.msra.mxu0 0
      %1279 = vmatprep.subr.bf16.mxu0 0
      %1280 = vmatpush1.bf16.msra.mxu0 0
      %1281 = vmatprep.mubr.bf16.mxu0 0
      %1282 = vmatmul.mubr.bf16.gmra.mrb[0].mxu0 %v1083
      %v1283 = vpop.f32.mrb[0].mxu0
      %v1284 = vadd.f32 0.0, %v1283
      %v1285 = vpop.f32.mrb[0].mxu0
      %v1286 = vpop.f32.mrb[0].mxu0
      %v1287 = vpop.f32.mrb[0].mxu0
      %1288 = vdwg.mxu0
      %v1289 = vmul.f32 %v1284, %v1129
      %v1290 = vadd.f32 %v1289, %v1136
      %s1291 = scalar_lea.vmem %s331, 24
      %1292 = vst [vmem:[%s1291] sm:$0xff] %v1290
      %s1293 = smul.u32 4, %s22
      %p1294 = scmp.lt.s32.totalorder %s21, 1
      %s1295 = scalar_select %p1294, %s21, 1
      %p1296 = scmp.lt.s32.totalorder %s1293, 7
      %s1297 = scalar_select %p1296, %s1293, 7
      %s1298 = smul.addr %s1295, 8
      %s1299 = sadd.s32 %s1297, %s1298
      %s1300 = smul.addr %s1299, 8
      %s1301 = scalar_lea.vmem %s6, %s1300
      // Predicated region
      $region45: #{downsample_forward.1} parent=43 // pred_check
        %p1302 = pneg %p189
      $region46: #{downsample_forward.1} parent=43 // pred_check_branch
        %1304 = sbr.rel (%p1302) target = $region48
      $region47: #{downsample_forward.1} parent=43 // pred_region
        %s1305 = smul.u32 4, %s22
      $region48: #{downsample_forward.1} parent=43 // pred_fallthru
        _
    $region44: #{downsample_forward.1} parent=5 // pred_fallthru
      _
    %p1306 = scmp.le.s32.totalorder 2, %s12
    // Predicated region
    $region49: #{downsample_forward.1} parent=5 // pred_check
      %p1307 = pneg %p1306
    $region50: #{downsample_forward.1} parent=5 // pred_check_branch
      %1309 = sbr.rel (%p1307) target = $region52
    $region51: #{downsample_forward.1} parent=5 // pred_region
      %s1310 = ssub.s32 %s12, 2
      // Predicated region
      $region53: #{downsample_forward.1} parent=51 // pred_check
        %p1311 = pneg %p195
      $region54: #{downsample_forward.1} parent=51 // pred_check_branch
        %1313 = sbr.rel (%p1311) target = $region56
      $region55: #{downsample_forward.1} parent=51 // pred_region
        %s1314 = smul.u32 4, %s24
        %p1315 = scmp.lt.s32.totalorder %s23, 1
        %s1316 = scalar_select %p1315, %s23, 1
        %p1317 = scmp.lt.s32.totalorder %s1314, 7
        %s1318 = scalar_select %p1317, %s1314, 7
        %s1319 = smul.addr %s1316, 8
        %s1320 = sadd.s32 %s1318, %s1319
        %s1321 = smul.addr %s1320, 8
        %s1322 = scalar_lea.vmem %s6, %s1321
      $region56: #{downsample_forward.1} parent=51 // pred_fallthru
        _
    $region52: #{downsample_forward.1} parent=5 // pred_fallthru
      _
  $region6: #{downsample_forward.1} parent=0 // loop_footer
    %s16 = sadd.s32 1, %s12
  $region7: #{downsample_forward.1} parent=0 // loop_footer_branch
    %11 = sbr.rel target = $region3
  $region8: #{downsample_forward.1} parent=0 // loop_exit
    _

</llo_original>
